<compile_context>
chip_gen: v5e
topology: v5e:2x2
jax: 0.10.0
libtpu: 0.0.40
codegen_flags: <defaults>
</compile_context>

<pallas_src>
import jax
import jax.numpy as jnp
from jax.experimental import pallas as pl
from jax.experimental.pallas import tpu as pltpu


def _residual_weighting_kernel(g_ref, b_ref, f_ref, m_ref, o_ref):
    # Pure VPU elementwise hot path: 1 vadd on a tiny (1, W) vreg, then
    # 2 vmul + 1 vadd + 1 vst per streamed vreg.
    scale = 1.0 + g_ref[...]            # (1, W), broadcasts over the row tile
    o_ref[...] = scale * f_ref[...] + b_ref[...] * m_ref[...]


def _pick_lane_width(rows_total, dim, max_width=512):
    """Largest W = k*dim with k | rows_total and W <= max(max_width, dim).

    Prefers a W that is a multiple of 128 (full-lane, unmasked stores)."""
    best, best128 = dim, None
    k = 1
    while k * dim <= max(max_width, dim):
        if rows_total % k == 0:
            w = k * dim
            best = w
            if w % 128 == 0:
                best128 = w
        k += 1
    return best128 if best128 is not None else best


def _pick_row_tile(rows, row_bytes, target_tile_bytes):
    """Biggest row tile within the VMEM budget, respecting (8, 128) rules."""
    target_rows = max(8, target_tile_bytes // max(row_bytes, 1))
    if rows <= target_rows:
        return rows                      # single full-extent block
    # Prefer a multiple of 8 that divides rows (no ragged tail).
    best = None
    t = 8
    while t <= target_rows:
        if rows % t == 0:
            best = t
        t += 8
    if best is not None:
        return best
    return (target_rows // 8) * 8        # ragged tail: Pallas masks the edge


def residual_weighting(fused, master, gamma, beta, *, target_tile_bytes=1 << 20):
    """fused, master: (B, S, D).  gamma, beta: (1, 1, D)."""
    B, S, D = fused.shape
    R = B * S
    N = R * D
    dtype = fused.dtype
    itemsize = jnp.dtype(dtype).itemsize

    W = _pick_lane_width(R, D)           # lane-dense width (multiple of D)
    k = W // D
    rows = N // W

    f2 = fused.reshape(rows, W)
    m2 = master.reshape(rows, W)
    g2 = jnp.tile(gamma.reshape(1, D), (1, k))
    b2 = jnp.tile(beta.reshape(1, D), (1, k))

    row_tile = _pick_row_tile(rows, W * itemsize, target_tile_bytes)
    grid = (pl.cdiv(rows, row_tile),)

    out2 = pl.pallas_call(
        _residual_weighting_kernel,
        out_shape=jax.ShapeDtypeStruct((rows, W), dtype),
        grid_spec=pltpu.PrefetchScalarGridSpec(
            num_scalar_prefetch=0,
            grid=grid,
            in_specs=[
                pl.BlockSpec((1, W), lambda i: (0, 0)),          # gamma (VMEM-resident)
                pl.BlockSpec((1, W), lambda i: (0, 0)),          # beta  (VMEM-resident)
                pl.BlockSpec((row_tile, W), lambda i: (i, 0)),   # fused
                pl.BlockSpec((row_tile, W), lambda i: (i, 0)),   # master
            ],
            out_specs=pl.BlockSpec((row_tile, W), lambda i: (i, 0)),
        ),
        compiler_params=pltpu.CompilerParams(
            dimension_semantics=("parallel",),   # shards grid across v7x's 2 TCs
        ),
    )(g2, b2, f2, m2)
    return out2.reshape(B, S, D)


if __name__ == "__main__":
    key = jax.random.PRNGKey(0)
    k1, k2, k3, k4 = jax.random.split(key, 4)

    B, S, D = 2, 8, 32
    fused = jax.random.normal(k1, (B, S, D), dtype=jnp.float32)
    master = jax.random.normal(k2, (B, S, D), dtype=jnp.float32)

    # Module __init__ uses zeros; use small non-zero values so the broadcast
    # path is actually exercised.
    gamma = 0.1 * jax.random.normal(k3, (1, 1, D), dtype=jnp.float32)
    beta = 0.1 * jax.random.normal(k4, (1, 1, D), dtype=jnp.float32)

    out = residual_weighting(fused, master, gamma, beta)
    out = jax.block_until_ready(out)

    ref = (1.0 + gamma) * fused + beta * master
    assert out.shape == (B, S, D)
    assert jnp.allclose(out, ref, atol=1e-6, rtol=1e-6)

    print("KERNEL_OK")
</pallas_src>

<mosaic_0001>
module attributes {stable_mosaic.version = 11 : i64} {
  func.func @_residual_weighting_kernel(%arg0: i32, %arg1: memref<1x512xf32, #tpu.memory_space<vmem>>, %arg2: memref<1x512xf32, #tpu.memory_space<vmem>>, %arg3: memref<1x512xf32, #tpu.memory_space<vmem>>, %arg4: memref<1x512xf32, #tpu.memory_space<vmem>>, %arg5: memref<1x512xf32, #tpu.memory_space<vmem>>) attributes {dimension_semantics = [#tpu.dimension_semantics<parallel>], iteration_bounds = array<i64: 1>, scalar_prefetch = 0 : i64, scratch_operands = 0 : i64, tpu.core_type = #tpu.core_type<tc>, window_params = [{pipeline_mode = #tpu.pipeline_mode<synchronous>, transform_indices = @transform_0, window_bounds = array<i64: 1, 512>}, {pipeline_mode = #tpu.pipeline_mode<synchronous>, transform_indices = @transform_1, window_bounds = array<i64: 1, 512>}, {transform_indices = @transform_2, window_bounds = array<i64: 1, 512>}, {transform_indices = @transform_3, window_bounds = array<i64: 1, 512>}, {transform_indices = @transform_4, window_bounds = array<i64: 1, 512>}]} {
    %c0 = arith.constant 0 : index
    %c0_0 = arith.constant 0 : index
    %0 = vector.load %arg1[%c0, %c0_0] : memref<1x512xf32, #tpu.memory_space<vmem>>, vector<1x512xf32>
    %cst = arith.constant 1.000000e+00 : f32
    %1 = vector.broadcast %cst : f32 to vector<1x512xf32>
    %2 = arith.addf %1, %0 : vector<1x512xf32>
    %c0_1 = arith.constant 0 : index
    %c0_2 = arith.constant 0 : index
    %3 = vector.load %arg3[%c0_1, %c0_2] : memref<1x512xf32, #tpu.memory_space<vmem>>, vector<1x512xf32>
    %4 = arith.mulf %2, %3 : vector<1x512xf32>
    %c0_3 = arith.constant 0 : index
    %c0_4 = arith.constant 0 : index
    %5 = vector.load %arg2[%c0_3, %c0_4] : memref<1x512xf32, #tpu.memory_space<vmem>>, vector<1x512xf32>
    %c0_5 = arith.constant 0 : index
    %c0_6 = arith.constant 0 : index
    %6 = vector.load %arg4[%c0_5, %c0_6] : memref<1x512xf32, #tpu.memory_space<vmem>>, vector<1x512xf32>
    %7 = arith.mulf %5, %6 : vector<1x512xf32>
    %8 = arith.addf %4, %7 : vector<1x512xf32>
    %c0_7 = arith.constant 0 : index
    %c0_8 = arith.constant 0 : index
    %9 = vector.load %arg5[%c0_7, %c0_8] : memref<1x512xf32, #tpu.memory_space<vmem>>, vector<1x512xf32>
    tpu.vector_store %arg5[%c0_7, %c0_8], %8 {strides = array<i32>} : memref<1x512xf32, #tpu.memory_space<vmem>>, vector<1x512xf32>,
    return
  }
  func.func @transform_0(%arg0: i32) -> (i32, i32) {
    %c0_i32 = arith.constant 0 : i32
    %c0_i32_0 = arith.constant 0 : i32
    %c0_i32_1 = arith.constant 0 : i32
    return %c0_i32, %c0_i32_0 : i32, i32
  }
  func.func @transform_1(%arg0: i32) -> (i32, i32) {
    %c0_i32 = arith.constant 0 : i32
    %c0_i32_0 = arith.constant 0 : i32
    %c0_i32_1 = arith.constant 0 : i32
    return %c0_i32, %c0_i32_0 : i32, i32
  }
  func.func @transform_2(%arg0: i32) -> (i32, i32) {
    %c0_i32 = arith.constant 0 : i32
    %c0_i32_0 = arith.constant 0 : i32
    return %arg0, %c0_i32 : i32, i32
  }
  func.func @transform_3(%arg0: i32) -> (i32, i32) {
    %c0_i32 = arith.constant 0 : i32
    %c0_i32_0 = arith.constant 0 : i32
    return %arg0, %c0_i32 : i32, i32
  }
  func.func @transform_4(%arg0: i32) -> (i32, i32) {
    %c0_i32 = arith.constant 0 : i32
    %c0_i32_0 = arith.constant 0 : i32
    return %arg0, %c0_i32 : i32, i32
  }
}

</mosaic_0001>

<llo_original>
// kernel: tpu_custom_call.1
$region0: #{tpu_custom_call.1}
  #allocation0 [shape = 'u32[]', space=smem, size = 0x4, offset = 0x4, fixed_abs, tag = 'smem constant byte address 0x4 - core index']
  #allocation1 [shape = 'u32[72,128]{1,0:T(1,128)}', space=vmem, size = 0x9000, scoped, tag = 'internal scratch']
  %s0 = inlined_call_operand.hbm [shape: f32[1,512], index: 0, kind: input, shape index: {}]
  %s1 = inlined_call_operand.hbm [shape: f32[1,512], index: 1, kind: input, shape index: {}]
  %s2 = inlined_call_operand.hbm [shape: f32[1,512], index: 2, kind: input, shape index: {}]
  %s3 = inlined_call_operand.hbm [shape: f32[1,512], index: 3, kind: input, shape index: {}]
  %s4 = inlined_call_operand.hbm [shape: f32[1,512], index: 4, kind: output, shape index: {}]
  %s5 = sld [smem:[#allocation0]]
  $region42: #{tpu_custom_call.1} parent=0
    _
  %s7 = ssub.s32 1, %s5
  %s8 = scalar_select 0, %s7, %s5
  $region1: #{tpu_custom_call.1} parent=0
    #allocation2 [shape = 'u8[2048]{0}', space=vmem, size = 0x800, scoped, tag = 'input window, operand 0, single buffered']
    #allocation3 [shape = 's32[1]{0}', space=sflag, size = 0x4, scoped, tag = 'scoped memory for tpu_custom_call.1']
    #allocation4 [shape = 's32[1]{0}', space=sflag, size = 0x4, scoped, tag = 'scoped memory for tpu_custom_call.1']
    #allocation5 [shape = 'u8[2048]{0}', space=vmem, size = 0x800, scoped, tag = 'input window, operand 1, single buffered']
    #allocation6 [shape = 's32[1]{0}', space=sflag, size = 0x4, scoped, tag = 'scoped memory for tpu_custom_call.1']
    #allocation7 [shape = 'u8[2048]{0}', space=vmem, size = 0x800, scoped, tag = 'input window, operand 2, single buffered']
    #allocation8 [shape = 'u8[2048]{0}', space=vmem, size = 0x800, scoped, tag = 'input window, operand 3, single buffered']
    #allocation9 [shape = 's32[1]{0}', space=sflag, size = 0x4, scoped, tag = 'scoped memory for tpu_custom_call.1']
    #allocation10 [shape = 'u8[2048]{0}', space=vmem, size = 0x800, scoped, tag = 'output window, operand 0, single buffered']
    %9 = vsyncpa [#allocation3], 0
    %10 = vsyncpa [#allocation6], 0
    %11 = vsyncpa [#allocation9], 0
    %12 = vsyncpa [#allocation4], 0
    // Predicated region
    $region2: #{tpu_custom_call.1} parent=1 // pred_check
      _
    $region3: #{tpu_custom_call.1} parent=1 // pred_check_branch
      %14 = sbr.rel (0) target = $region5
    $region4: #{tpu_custom_call.1} parent=1 // pred_region
      %16 = vsyncadd [#allocation3], 0
      %s18 = sshll.u32 %s0, 4
      %s19 = int_to_ptr.hbm [resolvable:$true] %s18
      %s20 = sshll.u32 [#allocation2], 4
      %s21 = int_to_ptr.vmem [resolvable:$true] %s20
      %23 = dma.hbm_to_vmem [thread:$0]  %s19, 64, %s21, [#allocation3]
    $region5: #{tpu_custom_call.1} parent=1 // pred_fallthru
      _
    // Predicated region
    $region6: #{tpu_custom_call.1} parent=1 // pred_check
      _
    $region7: #{tpu_custom_call.1} parent=1 // pred_check_branch
      %25 = sbr.rel (0) target = $region9
    $region8: #{tpu_custom_call.1} parent=1 // pred_region
      %27 = vsyncadd [#allocation6], 0
      %s29 = sshll.u32 %s1, 4
      %s30 = int_to_ptr.hbm [resolvable:$true] %s29
      %s31 = sshll.u32 [#allocation5], 4
      %s32 = int_to_ptr.vmem [resolvable:$true] %s31
      %34 = dma.hbm_to_vmem [thread:$0]  %s30, 64, %s32, [#allocation6]
    $region9: #{tpu_custom_call.1} parent=1 // pred_fallthru
      _
    // Predicated region
    $region10: #{tpu_custom_call.1} parent=1 // pred_check
      _
    $region11: #{tpu_custom_call.1} parent=1 // pred_check_branch
      %36 = sbr.rel (0) target = $region13
    $region12: #{tpu_custom_call.1} parent=1 // pred_region
      %38 = vsyncadd [#allocation6], 0
      %s40 = sshll.u32 %s2, 4
      %s41 = int_to_ptr.hbm [resolvable:$true] %s40
      %s42 = sshll.u32 [#allocation7], 4
      %s43 = int_to_ptr.vmem [resolvable:$true] %s42
      %45 = dma.hbm_to_vmem [thread:$0]  %s41, 64, %s43, [#allocation6]
    $region13: #{tpu_custom_call.1} parent=1 // pred_fallthru
      _
    // Predicated region
    $region14: #{tpu_custom_call.1} parent=1 // pred_check
      _
    $region15: #{tpu_custom_call.1} parent=1 // pred_check_branch
      %47 = sbr.rel (0) target = $region17
    $region16: #{tpu_custom_call.1} parent=1 // pred_region
      %49 = vsyncadd [#allocation9], 0
      %s51 = sshll.u32 %s3, 4
      %s52 = int_to_ptr.hbm [resolvable:$true] %s51
      %s53 = sshll.u32 [#allocation8], 4
      %s54 = int_to_ptr.vmem [resolvable:$true] %s53
      %56 = dma.hbm_to_vmem [thread:$0]  %s52, 64, %s54, [#allocation9]
    $region17: #{tpu_custom_call.1} parent=1 // pred_fallthru
      _
    // Predicated region
    $region18: #{tpu_custom_call.1} parent=1 // pred_check
      _
    $region19: #{tpu_custom_call.1} parent=1 // pred_check_branch
      %58 = sbr.rel (0) target = $region21
    $region20: #{tpu_custom_call.1} parent=1 // pred_region
      %60 = dma.done [#allocation3], 64
    $region21: #{tpu_custom_call.1} parent=1 // pred_fallthru
      _
    // Predicated region
    $region22: #{tpu_custom_call.1} parent=1 // pred_check
      _
    $region23: #{tpu_custom_call.1} parent=1 // pred_check_branch
      %62 = sbr.rel (0) target = $region25
    $region24: #{tpu_custom_call.1} parent=1 // pred_region
      %64 = dma.done [#allocation6], 64
    $region25: #{tpu_custom_call.1} parent=1 // pred_fallthru
      _
    // Predicated region
    $region26: #{tpu_custom_call.1} parent=1 // pred_check
      _
    $region27: #{tpu_custom_call.1} parent=1 // pred_check_branch
      %66 = sbr.rel (0) target = $region29
    $region28: #{tpu_custom_call.1} parent=1 // pred_region
      %68 = dma.done [#allocation6], 64
    $region29: #{tpu_custom_call.1} parent=1 // pred_fallthru
      _
    // Predicated region
    $region30: #{tpu_custom_call.1} parent=1 // pred_check
      _
    $region31: #{tpu_custom_call.1} parent=1 // pred_check_branch
      %70 = sbr.rel (0) target = $region33
    $region32: #{tpu_custom_call.1} parent=1 // pred_region
      %72 = dma.done [#allocation9], 64
    $region33: #{tpu_custom_call.1} parent=1 // pred_fallthru
      _
    %v73 = vld [vmem:[#allocation2] sm:$0xf]
    %v74 = vadd.f32 %v73, 1.0
    %v75 = vld [vmem:[#allocation7] sm:$0xf]
    %v76 = vmul.f32 %v74, %v75
    %v77 = vld [vmem:[#allocation5] sm:$0xf]
    %v78 = vld [vmem:[#allocation8] sm:$0xf]
    %v79 = vmul.f32 %v77, %v78
    %v80 = vadd.f32 %v76, %v79
    %v81 = vlaneseq
    %vm82 = vcmp.ge.s32.totalorder %v81, 0
    %vm83 = vcmp.lt.s32.totalorder %v81, 512
    %vm84 = vmand %vm82, %vm83
    %85 = vst.msk [vmem:[#allocation10] sm:$0xf] %vm84, %v80
    // Predicated region
    $region34: #{tpu_custom_call.1} parent=1 // pred_check
      _
    $region35: #{tpu_custom_call.1} parent=1 // pred_check_branch
      %87 = sbr.rel (0) target = $region37
    $region36: #{tpu_custom_call.1} parent=1 // pred_region
      %89 = vsyncadd [#allocation4], 0
      %s91 = sshll.u32 [#allocation10], 4
      %s92 = int_to_ptr.vmem [resolvable:$true] %s91
      %s93 = sshll.u32 %s4, 4
      %s94 = int_to_ptr.hbm [resolvable:$true] %s93
      %96 = dma.vmem_to_hbm [thread:$0]  %s92, 64, %s94, [#allocation4]
    $region37: #{tpu_custom_call.1} parent=1 // pred_fallthru
      _
    // Predicated region
    $region38: #{tpu_custom_call.1} parent=1 // pred_check
      _
    $region39: #{tpu_custom_call.1} parent=1 // pred_check_branch
      %98 = sbr.rel (0) target = $region41
    $region40: #{tpu_custom_call.1} parent=1 // pred_region
      %100 = dma.done [#allocation4], 64
    $region41: #{tpu_custom_call.1} parent=1 // pred_fallthru
      _
    %101 = vsyncpa [#allocation3], 1
    %102 = vsyncpa [#allocation6], 1
    %103 = vsyncpa [#allocation9], 1
    %104 = vsyncpa [#allocation4], 1

</llo_original>
